<compile_context>
chip_gen: v5e
topology: v5e:2x2
jax: 0.10.0
libtpu: 0.0.40
codegen_flags: <defaults>
</compile_context>

<pallas_src>
import jax
import jax.numpy as jnp
from jax.experimental import pallas as pl
from jax.experimental.pallas import tpu as pltpu


def _add_pe_kernel(x_ref, pe_ref, o_ref):
    # x_ref / o_ref: (St, Dl) when the batch tile is squeezed, else (Bt, St, Dl)
    # pe_ref:        (St, Dl)  -- broadcasts over the leading batch dim if present
    o_ref[...] = (x_ref[...] + pe_ref[...]).astype(o_ref.dtype)


def _num_tensorcores():
    # v5e / v6e have 1 TensorCore per chip, v7x has 2. Only used to gate the
    # batch split; falls back to 1 (never split) if the query is unavailable.
    try:
        info = pltpu.get_tpu_info()
        for attr in ("num_cores", "core_count", "tensorcore_count"):
            n = getattr(info, attr, None)
            if n:
                return int(n)
    except Exception:
        pass
    return 1


def positional_encoding_forward(x, pe, *, donate_input=False):
    """x: (B, S, D), pe: (pos_size, D). Returns x + pe[:S] (broadcast over B)."""
    B, S, D = x.shape
    pos_size, pe_dim = pe.shape
    assert pe_dim == D, "pe hidden dim must match input hidden dim"
    assert S <= pos_size, "sequence length exceeds pos_size"

    out_dtype = jnp.result_type(x.dtype, pe.dtype)
    x_item = jnp.dtype(x.dtype).itemsize
    pe_item = jnp.dtype(pe.dtype).itemsize
    out_item = jnp.dtype(out_dtype).itemsize

    # ---- choose a lane-dense 2-D "row" view of the per-batch (S, D) slab ----
    reshaped = False
    if D % 128 == 0:
        # Already lane-dense; keep (B, S, D); pe[:S] expressed via index_map.
        M, Dl = S, D
        x2 = x
        pe2 = None                      # decided after tile sizing (full vs sliced)
    elif (S * D) % 128 == 0:
        # Repack trailing (S, D) -> (M, Dl) with Dl a large multiple of 128.
        Dl = 128
        while Dl * 2 <= 2048 and (S * D) % (Dl * 2) == 0:
            Dl *= 2
        M = (S * D) // Dl
        x2 = x.reshape(B, M, Dl)
        pe2 = pe[:S].reshape(M, Dl)
        reshaped = True
    else:
        # TODO(synk): no lane-dense packing possible for this (S, D); last dim
        # < 128 lowers to masked partial stores (correct, just slower).
        M, Dl = S, D
        x2 = x
        pe2 = pe[:S]

    # ---- tile sizing: budget covers x + pe + out, each double-buffered ----
    VMEM_LIMIT = 48 * 1024 * 1024       # explicit scoped limit (v7x phys = 64 MiB)
    VMEM_BUDGET = 40 * 1024 * 1024      # resident-byte target (headroom vs limit)
    X_TILE_CAP = 8 * 1024 * 1024        # per-step x bytes; amortizes ~0.35us/step

    row_bytes_db = 2 * Dl * (x_item + pe_item + out_item)
    rows_budget = max(8, VMEM_BUDGET // row_bytes_db)
    rows_cap = max(8, X_TILE_CAP // (Dl * x_item))
    rows_target = min(rows_budget, rows_cap)

    if M > rows_target:
        St = max(8, (rows_target // 8) * 8)     # multiple of 8 (sublane rule)
        Bt = 1
    else:
        St = M
        Bt = max(1, min(B, rows_target // max(M, 1)))

    # Dual-TensorCore batch split: only when the chip has >= 2 cores and the
    # grid would otherwise be a single step (single-core chips keep big tiles).
    if pl.cdiv(M, St) * pl.cdiv(B, Bt) == 1 and B >= 2 and _num_tensorcores() >= 2:
        Bt = pl.cdiv(B, 2)

    if pe2 is None:
        # Full-pe path: pe[:S] via BlockSpec index_map only (no HBM slice copy);
        # valid under the (8,128) rule when St % 8 == 0 or S covers all of pe.
        pe2 = pe if (St % 8 == 0 or S == pos_size) else pe[:S]

    # Batch is the INNER grid axis so pe's block index (s, 0) repeats across
    # consecutive steps -> its DMA is elided; pe read ~once total from HBM.
    grid = (pl.cdiv(M, St), pl.cdiv(B, Bt))

    if Bt == 1:
        x_block = (pl.Squeezed(), St, Dl)       # kernel sees (St, Dl) refs
    else:
        x_block = (Bt, St, Dl)

    io_aliases = {}
    if donate_input and x2.dtype == out_dtype:
        io_aliases = {0: 0}                     # reuse x's HBM buffer for out

    cost = pl.CostEstimate(
        flops=B * M * Dl,
        transcendentals=0,
        bytes_accessed=B * M * Dl * (x_item + out_item) + M * Dl * pe_item,
    )

    out = pl.pallas_call(
        _add_pe_kernel,
        out_shape=jax.ShapeDtypeStruct((B, M, Dl), out_dtype),
        grid_spec=pltpu.PrefetchScalarGridSpec(
            num_scalar_prefetch=0,
            grid=grid,
            in_specs=[
                pl.BlockSpec(x_block, lambda s, b: (b, s, 0)),
                pl.BlockSpec((St, Dl), lambda s, b: (s, 0)),
            ],
            out_specs=pl.BlockSpec(x_block, lambda s, b: (b, s, 0)),
        ),
        compiler_params=pltpu.CompilerParams(
            dimension_semantics=("parallel", "parallel"),
            vmem_limit_bytes=VMEM_LIMIT,
        ),
        input_output_aliases=io_aliases,
        cost_estimate=cost,
    )(x2, pe2)

    return out.reshape(B, S, D) if reshaped else out


if __name__ == "__main__":
    key = jax.random.PRNGKey(0)
    k_pe1, k_x1, k_pe2, k_x2, k_pe3, k_x3 = jax.random.split(key, 6)

    # --- Test 1: module config pos_size=16, dim=32; input (2, 8, 32) ---------
    # D < 128 but S*D % 128 == 0 -> lane-packed (reshape) path.
    pos_size, dim = 16, 32
    B, S, D = 2, 8, dim
    pe1 = jax.random.uniform(k_pe1, (pos_size, dim), dtype=jnp.float32) * 2.0 - 1.0
    x1 = jax.random.normal(k_x1, (B, S, D), dtype=jnp.float32)
    out1 = jax.block_until_ready(positional_encoding_forward(x1, pe1))
    ref1 = x1 + pe1[:S]
    assert out1.shape == (B, S, D)
    assert jnp.allclose(out1, ref1, atol=1e-6), "mismatch vs reference (test 1)"

    # --- Test 2: D % 128 == 0 -> direct lane-dense path, full pe via index_map
    pos_size2, dim2 = 32, 128
    B2, S2, D2 = 4, 16, dim2
    pe2_ = jax.random.uniform(k_pe2, (pos_size2, dim2), dtype=jnp.float32) * 2.0 - 1.0
    x2_ = jax.random.normal(k_x2, (B2, S2, D2), dtype=jnp.float32)
    out2 = jax.block_until_ready(positional_encoding_forward(x2_, pe2_))
    ref2 = x2_ + pe2_[:S2]
    assert out2.shape == (B2, S2, D2)
    assert jnp.allclose(out2, ref2, atol=1e-6), "mismatch vs reference (test 2)"

    # --- Test 3: non-128-divisible fallback path (masked stores, still correct)
    pos_size3, dim3 = 16, 24
    B3, S3, D3 = 2, 5, dim3
    pe3_ = jax.random.uniform(k_pe3, (pos_size3, dim3), dtype=jnp.float32) * 2.0 - 1.0
    x3_ = jax.random.normal(k_x3, (B3, S3, D3), dtype=jnp.float32)
    out3 = jax.block_until_ready(positional_encoding_forward(x3_, pe3_))
    ref3 = x3_ + pe3_[:S3]
    assert out3.shape == (B3, S3, D3)
    assert jnp.allclose(out3, ref3, atol=1e-6), "mismatch vs reference (test 3)"

    # --- Test 4: mixed precision (bf16 input + f32 pe -> f32 out), taller seq -
    B4, S4, D4 = 2, 256, 128
    pe4_ = jax.random.uniform(key, (512, D4), dtype=jnp.float32) * 2.0 - 1.0
    x4_ = jax.random.normal(k_x1, (B4, S4, D4), dtype=jnp.bfloat16)
    out4 = jax.block_until_ready(positional_encoding_forward(x4_, pe4_))
    ref4 = x4_.astype(jnp.float32) + pe4_[:S4]
    assert out4.dtype == jnp.float32 and out4.shape == (B4, S4, D4)
    assert jnp.allclose(out4, ref4, atol=1e-2), "mismatch vs reference (test 4)"

    print("KERNEL_OK")
</pallas_src>

<mosaic_0001>
module attributes {stable_mosaic.version = 11 : i64} {
  func.func @_add_pe_kernel(%arg0: i32, %arg1: i32, %arg2: memref<2x1x256xf32, #tpu.memory_space<vmem>>, %arg3: memref<1x256xf32, #tpu.memory_space<vmem>>, %arg4: memref<2x1x256xf32, #tpu.memory_space<vmem>>) attributes {dimension_semantics = [#tpu.dimension_semantics<parallel>, #tpu.dimension_semantics<parallel>], iteration_bounds = array<i64: 1, 1>, scalar_prefetch = 0 : i64, scratch_operands = 0 : i64, tpu.core_type = #tpu.core_type<tc>, window_params = [{transform_indices = @transform_0, window_bounds = array<i64: 2, 1, 256>}, {transform_indices = @transform_1, window_bounds = array<i64: 1, 256>}, {transform_indices = @transform_2, window_bounds = array<i64: 2, 1, 256>}]} {
    %c0 = arith.constant 0 : index
    %c0_0 = arith.constant 0 : index
    %c0_1 = arith.constant 0 : index
    %0 = vector.load %arg2[%c0, %c0_0, %c0_1] : memref<2x1x256xf32, #tpu.memory_space<vmem>>, vector<2x1x256xf32>
    %c0_2 = arith.constant 0 : index
    %c0_3 = arith.constant 0 : index
    %1 = vector.load %arg3[%c0_2, %c0_3] : memref<1x256xf32, #tpu.memory_space<vmem>>, vector<1x256xf32>
    %2 = vector.shape_cast %1 : vector<1x256xf32> to vector<1x1x256xf32>
    %3 = vector.broadcast %2 : vector<1x1x256xf32> to vector<2x1x256xf32>
    %4 = arith.addf %0, %3 : vector<2x1x256xf32>
    %c0_4 = arith.constant 0 : index
    %c0_5 = arith.constant 0 : index
    %c0_6 = arith.constant 0 : index
    %5 = vector.load %arg4[%c0_4, %c0_5, %c0_6] : memref<2x1x256xf32, #tpu.memory_space<vmem>>, vector<2x1x256xf32>
    tpu.vector_store %arg4[%c0_4, %c0_5, %c0_6], %4 {strides = array<i32>} : memref<2x1x256xf32, #tpu.memory_space<vmem>>, vector<2x1x256xf32>,
    return
  }
  func.func @transform_0(%arg0: i32, %arg1: i32) -> (i32, i32, i32) {
    %c0_i32 = arith.constant 0 : i32
    %c0_i32_0 = arith.constant 0 : i32
    return %arg1, %arg0, %c0_i32 : i32, i32, i32
  }
  func.func @transform_1(%arg0: i32, %arg1: i32) -> (i32, i32) {
    %c0_i32 = arith.constant 0 : i32
    %c0_i32_0 = arith.constant 0 : i32
    return %arg0, %c0_i32 : i32, i32
  }
  func.func @transform_2(%arg0: i32, %arg1: i32) -> (i32, i32, i32) {
    %c0_i32 = arith.constant 0 : i32
    %c0_i32_0 = arith.constant 0 : i32
    return %arg1, %arg0, %c0_i32 : i32, i32, i32
  }
}

</mosaic_0001>

<llo_original>
// kernel: tpu_custom_call.1
$region0: #{tpu_custom_call.1}
  #allocation0 [shape = 'u32[]', space=smem, size = 0x4, offset = 0x4, fixed_abs, tag = 'smem constant byte address 0x4 - core index']
  #allocation1 [shape = 'u32[72,128]{1,0:T(1,128)}', space=vmem, size = 0x9000, scoped, tag = 'internal scratch']
  %s0 = inlined_call_operand.hbm [shape: f32[2,1,256], index: 0, kind: input, shape index: {}]
  %s1 = inlined_call_operand.hbm [shape: f32[1,256], index: 1, kind: input, shape index: {}]
  %s2 = inlined_call_operand.hbm [shape: f32[2,1,256], index: 2, kind: output, shape index: {}]
  %s3 = sld [smem:[#allocation0]]
  $region26: #{tpu_custom_call.1} parent=0
    _
  %s5 = ssub.s32 1, %s3
  %s6 = scalar_select 0, %s5, %s3
  $region1: #{tpu_custom_call.1} parent=0
    #allocation2 [shape = 'u8[2048]{0}', space=vmem, size = 0x800, scoped, tag = 'input window, operand 0, single buffered']
    #allocation3 [shape = 's32[1]{0}', space=sflag, size = 0x4, scoped, tag = 'scoped memory for tpu_custom_call.1']
    #allocation4 [shape = 's32[1]{0}', space=sflag, size = 0x4, scoped, tag = 'scoped memory for tpu_custom_call.1']
    #allocation5 [shape = 'u8[1024]{0}', space=vmem, size = 0x400, scoped, tag = 'input window, operand 1, single buffered']
    #allocation6 [shape = 's32[1]{0}', space=sflag, size = 0x4, scoped, tag = 'scoped memory for tpu_custom_call.1']
    #allocation7 [shape = 'u8[2048]{0}', space=vmem, size = 0x800, scoped, tag = 'output window, operand 0, single buffered']
    %7 = vsyncpa [#allocation3], 0
    %8 = vsyncpa [#allocation6], 0
    %9 = vsyncpa [#allocation4], 0
    // Predicated region
    $region2: #{tpu_custom_call.1} parent=1 // pred_check
      _
    $region3: #{tpu_custom_call.1} parent=1 // pred_check_branch
      %11 = sbr.rel (0) target = $region5
    $region4: #{tpu_custom_call.1} parent=1 // pred_region
      %13 = vsyncadd [#allocation3], 0
      %s14 = sshll.u32 %s0, 4
      %s15 = int_to_ptr.hbm [resolvable:$true] %s14
      %s16 = sshll.u32 [#allocation2], 4
      %s17 = int_to_ptr.vmem [resolvable:$true] %s16
      %22 = dma.hbm_to_vmem [thread:$0]  %s15, 64, %s17, [#allocation3], 32, 32, 2
    $region5: #{tpu_custom_call.1} parent=1 // pred_fallthru
      _
    // Predicated region
    $region6: #{tpu_custom_call.1} parent=1 // pred_check
      _
    $region7: #{tpu_custom_call.1} parent=1 // pred_check_branch
      %24 = sbr.rel (0) target = $region9
    $region8: #{tpu_custom_call.1} parent=1 // pred_region
      %26 = vsyncadd [#allocation6], 0
      %s28 = sshll.u32 %s1, 4
      %s29 = int_to_ptr.hbm [resolvable:$true] %s28
      %s30 = sshll.u32 [#allocation5], 4
      %s31 = int_to_ptr.vmem [resolvable:$true] %s30
      %33 = dma.hbm_to_vmem [thread:$0]  %s29, 32, %s31, [#allocation6]
    $region9: #{tpu_custom_call.1} parent=1 // pred_fallthru
      _
    // Predicated region
    $region10: #{tpu_custom_call.1} parent=1 // pred_check
      _
    $region11: #{tpu_custom_call.1} parent=1 // pred_check_branch
      %35 = sbr.rel (0) target = $region13
    $region12: #{tpu_custom_call.1} parent=1 // pred_region
      %37 = dma.done [#allocation3], 64
    $region13: #{tpu_custom_call.1} parent=1 // pred_fallthru
      _
    // Predicated region
    $region14: #{tpu_custom_call.1} parent=1 // pred_check
      _
    $region15: #{tpu_custom_call.1} parent=1 // pred_check_branch
      %39 = sbr.rel (0) target = $region17
    $region16: #{tpu_custom_call.1} parent=1 // pred_region
      %41 = dma.done [#allocation6], 32
    $region17: #{tpu_custom_call.1} parent=1 // pred_fallthru
      _
    %v42 = vld [vmem:[#allocation2] sm:$0x3]
    %v43 = vld [vmem:[#allocation2 + $0x2] sm:$0x3]
    %v44 = vld [vmem:[#allocation5] sm:$0x3]
    %v45 = vadd.f32 %v42, %v44
    %v46 = vadd.f32 %v43, %v44
    %v47 = vlaneseq
    %vm48 = vcmp.ge.s32.totalorder %v47, 0
    %vm49 = vcmp.lt.s32.totalorder %v47, 256
    %vm50 = vmand %vm48, %vm49
    %51 = vst.msk [vmem:[#allocation7] sm:$0x3] %vm50, %v45
    %52 = vst.msk [vmem:[#allocation7 + $0x2] sm:$0x3] %vm50, %v46
    // Predicated region
    $region18: #{tpu_custom_call.1} parent=1 // pred_check
      _
    $region19: #{tpu_custom_call.1} parent=1 // pred_check_branch
      %54 = sbr.rel (0) target = $region21
    $region20: #{tpu_custom_call.1} parent=1 // pred_region
      %56 = vsyncadd [#allocation4], 0
      %s57 = sshll.u32 [#allocation7], 4
      %s58 = int_to_ptr.vmem [resolvable:$true] %s57
      %s59 = sshll.u32 %s2, 4
      %s60 = int_to_ptr.hbm [resolvable:$true] %s59
      %65 = dma.vmem_to_hbm [thread:$0]  %s58, 64, %s60, [#allocation4], 32, 32, 2
    $region21: #{tpu_custom_call.1} parent=1 // pred_fallthru
      _
    // Predicated region
    $region22: #{tpu_custom_call.1} parent=1 // pred_check
      _
    $region23: #{tpu_custom_call.1} parent=1 // pred_check_branch
      %67 = sbr.rel (0) target = $region25
    $region24: #{tpu_custom_call.1} parent=1 // pred_region
      %69 = dma.done [#allocation4], 64
    $region25: #{tpu_custom_call.1} parent=1 // pred_fallthru
      _
    %70 = vsyncpa [#allocation3], 1
    %71 = vsyncpa [#allocation6], 1
    %72 = vsyncpa [#allocation4], 1

</llo_original>
